<compile_context>
chip_gen: v6e
topology: v6e:2x2x1
jax: 0.10.0
libtpu: 0.0.40
codegen_flags: <defaults>
</compile_context>

<pallas_src>
import functools
from typing import NamedTuple

import jax
import jax.numpy as jnp
from jax.experimental import pallas as pl
from jax.experimental.pallas import tpu as pltpu

_LANE = 128     # vreg lane width
_SUBLANE = 8    # f32 sublanes per vreg
_MAX_TB = 1024  # ~85% of HBM roofline per the measured tile sweep


def _round_up(n, m):
    return ((n + m - 1) // m) * m


# -----------------------------------------------------------------------------
# Chip introspection (best effort, safe fallbacks).
# -----------------------------------------------------------------------------
def _chip_info():
    """Returns (vmem_capacity_bytes, tensorcores_per_chip, mxu_dim)."""
    vmem_cap = 64 << 20          # conservative default (v7x per-core VMEM)
    try:
        vmem_cap = int(pltpu.get_tpu_info().vmem_capacity_bytes)
    except Exception:
        pass
    kind = ""
    try:
        kind = jax.devices()[0].device_kind.lower()
    except Exception:
        pass
    n_tc = 2 if ("v7" in kind or "v4" in kind or "v5p" in kind) else 1
    mxu_m = 256 if ("v6" in kind or "v7" in kind) else 128
    return vmem_cap, n_tc, mxu_m


# -----------------------------------------------------------------------------
# Kernels
# -----------------------------------------------------------------------------
def _rnet_kernel_resident(x_ref, w1_ref, b1_ref, w2_ref, b2_ref, o_ref):
    # x cast per-tile (no wrapper copy); MXU matmul with f32 accumulation.
    h = jnp.dot(x_ref[...].astype(w1_ref.dtype), w1_ref[...],
                preferred_element_type=jnp.float32)
    h = h + b1_ref[...]
    h = jnp.maximum(h, 0.2 * h)              # LeakyReLU(0.2): single VALU max
    # Dropout: identity at inference.
    # TODO(synk): training-mode dropout would use pltpu.prng_seed / prng_random_bits.
    out = jnp.dot(h.astype(w2_ref.dtype), w2_ref[...],
                  preferred_element_type=jnp.float32)
    o_ref[...] = (out + b2_ref[...]).astype(o_ref.dtype)


def _rnet_kernel_tiled(x_ref, w1_ref, b1_ref, w2_ref, b2_ref, o_ref, acc_ref):
    # Grid = (batch tiles, hidden blocks).  The hidden axis produces one column
    # block of h per step (matmul-1 N tile) which is also one K chunk of matmul-2,
    # accumulated into an f32 VMEM scratch; output written on the last hidden step.
    j = pl.program_id(1)

    @pl.when(j == 0)
    def _init():
        acc_ref[...] = jnp.zeros_like(acc_ref)

    h = jnp.dot(x_ref[...].astype(w1_ref.dtype), w1_ref[...],
                preferred_element_type=jnp.float32)
    h = h + b1_ref[...]
    h = jnp.maximum(h, 0.2 * h)
    acc_ref[...] += jnp.dot(h.astype(w2_ref.dtype), w2_ref[...],
                            preferred_element_type=jnp.float32)

    @pl.when(j == pl.num_programs(1) - 1)
    def _finalize():
        o_ref[...] = (acc_ref[...] + b2_ref[...]).astype(o_ref.dtype)


# -----------------------------------------------------------------------------
# Parameter preparation (done once, NOT per forward call).
# -----------------------------------------------------------------------------
class RNetParams(NamedTuple):
    w1: jax.Array   # (in_p, out_p) padded, matmul dtype
    b1: jax.Array   # (1, out_p) f32
    w2: jax.Array   # (out_p, out_p) padded, matmul dtype
    b2: jax.Array   # (1, out_p) f32
    in_c: int
    out_c: int


def prepare_rnet_params(w1, b1, w2, b2, *, matmul_dtype=jnp.bfloat16,
                        feature_align=_LANE):
    """Pad + cast the weights once.  w1:(in_c,out_c) (x@W layout), b1:(out_c,),
    w2:(out_c,out_c), b2:(out_c,).  matmul_dtype=None keeps the weight dtype
    (strict f32 path).  Zero padding keeps the math exact.  feature_align can be
    set to 256 on v6e/v7x for compute-bound narrow-feature cases."""
    in_c, out_c = w1.shape
    dot_dtype = (jnp.dtype(matmul_dtype) if matmul_dtype is not None
                 else jnp.dtype(w1.dtype))
    in_p = _round_up(in_c, feature_align)
    out_p = _round_up(out_c, feature_align)

    def pad2(a, shape):
        if a.shape == shape and a.dtype == dot_dtype:
            return a
        return jnp.pad(a, ((0, shape[0] - a.shape[0]),
                           (0, shape[1] - a.shape[1]))).astype(dot_dtype)

    w1_p = pad2(w1, (in_p, out_p))
    w2_p = pad2(w2, (out_p, out_p))
    b1_p = jnp.pad(b1, (0, out_p - out_c)).astype(jnp.float32).reshape(1, out_p)
    b2_p = jnp.pad(b2, (0, out_p - out_c)).astype(jnp.float32).reshape(1, out_p)
    return RNetParams(w1_p, b1_p, w2_p, b2_p, int(in_c), int(out_c))


# -----------------------------------------------------------------------------
# VMEM accounting (single source of truth for tile sizing AND vmem_limit_bytes).
# -----------------------------------------------------------------------------
def _resident_vmem(in_p, out_p, xin_b, dot_b, out_b):
    weights = (in_p * out_p + out_p * out_p) * dot_b + 2 * out_p * 4
    per_row = (2 * in_p * xin_b          # double-buffered x tile
               + 2 * out_p * out_b       # double-buffered out tile
               + 2 * out_p * 4           # f32 h + f32 second-dot result
               + in_p * dot_b            # x downcast feeding the MXU
               + out_p * dot_b)          # h downcast feeding the MXU
    return weights, per_row


def _tiled_vmem(th, in_p, out_p, xin_b, dot_b, out_b):
    weights = (2 * (in_p * th + th * out_p) * dot_b   # dbl-buffered W1/W2 blocks
               + 2 * th * 4 + out_p * 4)              # b1 blocks + resident b2
    per_row = (2 * in_p * xin_b
               + 2 * out_p * out_b
               + out_p * 4               # f32 accumulator scratch
               + out_p * 4               # f32 second-dot result
               + th * 4 + th * dot_b     # f32 h block + its downcast
               + in_p * dot_b)
    return weights, per_row


def _align_tb(tb, mxu_m):
    if tb >= mxu_m:
        return (tb // mxu_m) * mxu_m
    return max((tb // _SUBLANE) * _SUBLANE, _SUBLANE)


def _balance_steps(B, tb, n_tc):
    steps = pl.cdiv(B, tb)
    if n_tc >= 2:
        if steps == 1 and B >= 2 * _SUBLANE:
            steps = 2                     # give the second TensorCore work
        elif steps > 1 and steps % 2 == 1:
            steps += 1                    # even step count -> no idle-core tail
    # Rebalance tb so zero-row padding is bounded (~8*steps rows), never inflated.
    return max(min(tb, _round_up(pl.cdiv(B, steps), _SUBLANE)), _SUBLANE)


# -----------------------------------------------------------------------------
# Forward
# -----------------------------------------------------------------------------
def rnet_forward(x, params: RNetParams, *, tb=None, tile_h=None, force_tiled=False):
    """x: (B, in_c).  Returns (B, out_c) in x.dtype."""
    B, in_c = x.shape
    assert in_c == params.in_c, (in_c, params.in_c)
    out_c = params.out_c
    out_dtype = x.dtype
    w1_p, b1_p, w2_p, b2_p = params.w1, params.b1, params.w2, params.b2
    in_p, out_p = w1_p.shape
    dot_dtype = w1_p.dtype
    dot_b = jnp.dtype(dot_dtype).itemsize
    out_b = jnp.dtype(out_dtype).itemsize

    # x handed to the kernel keeps its dtype when the K dim is already aligned
    # (cast happens per-tile in the kernel); pad+cast fused only when K needs padding.
    feature_pad = in_p != in_c
    xin_dtype = dot_dtype if feature_pad else x.dtype
    xin_b = jnp.dtype(xin_dtype).itemsize

    vmem_cap, n_tc, mxu_m = _chip_info()
    vmem_budget = int(vmem_cap * 0.70)           # generation-aware tile budget
    want_rows = min(_round_up(B, _SUBLANE), 256)

    w_res, row_res = _resident_vmem(in_p, out_p, xin_b, dot_b, out_b)
    use_resident = (not force_tiled) and (w_res + row_res * want_rows <= vmem_budget)

    if use_resident:
        if tb is None:
            avail = vmem_budget - w_res
            tb = min(max(avail // row_res, _SUBLANE), _MAX_TB,
                     _round_up(B, _SUBLANE))
            tb = _balance_steps(B, _align_tb(tb, mxu_m), n_tc)
        vmem_need = w_res + row_res * tb
    else:
        # Weight-tiled fallback: stream W1 column blocks / W2 row blocks of width
        # tile_h along the hidden dim (required when resident weights overflow VMEM,
        # e.g. 4096x4096 bf16 on v7x).
        if tile_h is None:
            cand = [t for t in (1024, 512, 256, 128) if out_p % t == 0]
            tile_h = cand[-1]
            for t in cand:
                w_t, row_t = _tiled_vmem(t, in_p, out_p, xin_b, dot_b, out_b)
                if w_t + row_t * want_rows <= vmem_budget:
                    tile_h = t
                    break
        assert out_p % tile_h == 0, (out_p, tile_h)
        w_t, row_t = _tiled_vmem(tile_h, in_p, out_p, xin_b, dot_b, out_b)
        if tb is None:
            avail = max(vmem_budget - w_t, row_t * _SUBLANE)
            tb = min(max(avail // row_t, _SUBLANE), _MAX_TB,
                     _round_up(B, _SUBLANE))
            tb = _balance_steps(B, _align_tb(tb, mxu_m), n_tc)
        vmem_need = w_t + row_t * tb

    B_pad = _round_up(B, tb)

    if feature_pad or B_pad != B:
        x_in = jnp.pad(x, ((0, B_pad - B), (0, in_p - in_c)))
        if feature_pad:
            x_in = x_in.astype(dot_dtype)    # single fused pad+cast
    else:
        x_in = x                              # zero-copy fast path

    # Never clamp the scoped-VMEM limit below what the chosen tiling needs.
    vmem_limit = int(min(max(vmem_need + (2 << 20), 32 << 20), vmem_cap))

    flops = 2 * B * in_c * out_c + 2 * B * out_c * out_c
    bytes_accessed = int(x_in.size * x_in.dtype.itemsize
                         + (w1_p.size + w2_p.size) * dot_b
                         + (b1_p.size + b2_p.size) * 4
                         + B_pad * out_p * out_b)
    cost = pl.CostEstimate(flops=flops, transcendentals=0,
                           bytes_accessed=bytes_accessed)

    resident = functools.partial(pl.BlockSpec, pipeline_mode=pl.Buffered(1))

    if use_resident:
        out = pl.pallas_call(
            _rnet_kernel_resident,
            out_shape=jax.ShapeDtypeStruct((B_pad, out_p), out_dtype),
            grid_spec=pltpu.PrefetchScalarGridSpec(
                num_scalar_prefetch=0,
                grid=(B_pad // tb,),
                in_specs=[
                    pl.BlockSpec((tb, in_p), lambda i: (i, 0)),       # x (pipelined)
                    resident((in_p, out_p), lambda i: (0, 0)),        # W1 (resident)
                    resident((1, out_p), lambda i: (0, 0)),           # b1
                    resident((out_p, out_p), lambda i: (0, 0)),       # W2 (resident)
                    resident((1, out_p), lambda i: (0, 0)),           # b2
                ],
                out_specs=pl.BlockSpec((tb, out_p), lambda i: (i, 0)),  # lane-dense
            ),
            compiler_params=pltpu.CompilerParams(
                dimension_semantics=("parallel",),
                vmem_limit_bytes=vmem_limit),
            cost_estimate=cost,
        )(x_in, w1_p, b1_p, w2_p, b2_p)
    else:
        out = pl.pallas_call(
            _rnet_kernel_tiled,
            out_shape=jax.ShapeDtypeStruct((B_pad, out_p), out_dtype),
            grid_spec=pltpu.PrefetchScalarGridSpec(
                num_scalar_prefetch=0,
                grid=(B_pad // tb, out_p // tile_h),
                in_specs=[
                    pl.BlockSpec((tb, in_p), lambda i, j: (i, 0)),       # x
                    pl.BlockSpec((in_p, tile_h), lambda i, j: (0, j)),   # W1 cols
                    pl.BlockSpec((1, tile_h), lambda i, j: (0, j)),      # b1 block
                    pl.BlockSpec((tile_h, out_p), lambda i, j: (j, 0)),  # W2 rows
                    resident((1, out_p), lambda i, j: (0, 0)),           # b2
                ],
                out_specs=pl.BlockSpec((tb, out_p), lambda i, j: (i, 0)),
                scratch_shapes=[pltpu.VMEM((tb, out_p), jnp.float32)],
            ),
            compiler_params=pltpu.CompilerParams(
                dimension_semantics=("parallel", "arbitrary"),
                vmem_limit_bytes=vmem_limit),
            cost_estimate=cost,
        )(x_in, w1_p, b1_p, w2_p, b2_p)

    if B_pad == B and out_p == out_c:
        return out                       # aligned common case: no extra slice copy
    return out[:B, :out_c]


# -----------------------------------------------------------------------------
# Init / reference (match the PyTorch module)
# -----------------------------------------------------------------------------
def init_rnet_params(key, in_c, out_c, dtype=jnp.float32):
    """nn.init.kaiming_normal_ (fan_in = torch weight.shape[1], gain=sqrt(2)),
    biases zero.  Weights returned pre-transposed to (in, out) for x @ W."""
    k1, k2 = jax.random.split(key)
    w1_t = ((2.0 / in_c) ** 0.5) * jax.random.normal(k1, (out_c, in_c), dtype)
    w2_t = ((2.0 / out_c) ** 0.5) * jax.random.normal(k2, (out_c, out_c), dtype)
    return w1_t.T, jnp.zeros((out_c,), dtype), w2_t.T, jnp.zeros((out_c,), dtype)


def rnet_reference(x, w1, b1, w2, b2):
    h = x @ w1 + b1
    h = jnp.where(h > 0, h, 0.2 * h)
    return h @ w2 + b2


if __name__ == "__main__":
    key = jax.random.PRNGKey(0)
    k_x, k_p, k_x2, k_p2 = jax.random.split(key, 4)

    # Small shapes consistent with the module: batch=8, in_c=16, out_c=32.
    B, in_c, out_c = 8, 16, 32
    x = jax.random.normal(k_x, (B, in_c), jnp.float32)
    w1, b1, w2, b2 = init_rnet_params(k_p, in_c, out_c)
    ref = rnet_reference(x, w1, b1, w2, b2)

    # f32 MXU path: strict correctness check.
    params_f32 = prepare_rnet_params(w1, b1, w2, b2, matmul_dtype=None)
    out_f32 = jax.block_until_ready(rnet_forward(x, params_f32))
    assert out_f32.shape == (B, out_c), out_f32.shape
    assert jnp.allclose(out_f32, ref, atol=1e-4, rtol=1e-4), "f32 path mismatch"

    # bf16 MXU path (default perf config): looser tolerance for the cast.
    params_bf16 = prepare_rnet_params(w1, b1, w2, b2)
    out_bf16 = jax.block_until_ready(rnet_forward(x, params_bf16))
    assert out_bf16.shape == (B, out_c), out_bf16.shape
    assert jnp.allclose(out_bf16, ref, atol=1e-1, rtol=1e-1), "bf16 path mismatch"

    # Weight-tiled fallback (forced at small shapes) so the large-weight / v7x
    # path is exercised: 2 hidden blocks -> real accumulation across grid steps.
    B2, in_c2, out_c2 = 24, 48, 256
    x2 = jax.random.normal(k_x2, (B2, in_c2), jnp.float32)
    w1b, b1b, w2b, b2b = init_rnet_params(k_p2, in_c2, out_c2)
    ref2 = rnet_reference(x2, w1b, b1b, w2b, b2b)
    params2 = prepare_rnet_params(w1b, b1b, w2b, b2b)
    out_tiled = jax.block_until_ready(
        rnet_forward(x2, params2, force_tiled=True, tile_h=128))
    assert out_tiled.shape == (B2, out_c2), out_tiled.shape
    assert jnp.allclose(out_tiled, ref2, atol=2e-1, rtol=2e-1), "tiled path mismatch"

    print("KERNEL_OK")
</pallas_src>

<mosaic_0001>
module attributes {stable_mosaic.version = 11 : i64} {
  func.func @_rnet_kernel_resident(%arg0: i32, %arg1: memref<8x128xf32, #tpu.memory_space<vmem>>, %arg2: memref<128x128xf32, #tpu.memory_space<vmem>>, %arg3: memref<1x128xf32, #tpu.memory_space<vmem>>, %arg4: memref<128x128xf32, #tpu.memory_space<vmem>>, %arg5: memref<1x128xf32, #tpu.memory_space<vmem>>, %arg6: memref<8x128xf32, #tpu.memory_space<vmem>>) attributes {dimension_semantics = [#tpu.dimension_semantics<parallel>], iteration_bounds = array<i64: 1>, scalar_prefetch = 0 : i64, scratch_operands = 0 : i64, tpu.core_type = #tpu.core_type<tc>, window_params = [{transform_indices = @transform_0, window_bounds = array<i64: 8, 128>}, {pipeline_mode = #tpu.pipeline_mode<synchronous>, transform_indices = @transform_1, window_bounds = array<i64: 128, 128>}, {pipeline_mode = #tpu.pipeline_mode<synchronous>, transform_indices = @transform_2, window_bounds = array<i64: 1, 128>}, {pipeline_mode = #tpu.pipeline_mode<synchronous>, transform_indices = @transform_3, window_bounds = array<i64: 128, 128>}, {pipeline_mode = #tpu.pipeline_mode<synchronous>, transform_indices = @transform_4, window_bounds = array<i64: 1, 128>}, {transform_indices = @transform_5, window_bounds = array<i64: 8, 128>}]} {
    %c0 = arith.constant 0 : index
    %c0_0 = arith.constant 0 : index
    %0 = vector.load %arg1[%c0, %c0_0] : memref<8x128xf32, #tpu.memory_space<vmem>>, vector<8x128xf32>
    %c0_1 = arith.constant 0 : index
    %c0_2 = arith.constant 0 : index
    %1 = vector.load %arg2[%c0_1, %c0_2] : memref<128x128xf32, #tpu.memory_space<vmem>>, vector<128x128xf32>
    %cst = arith.constant dense<0.000000e+00> : vector<8x128xf32>
    %2 = tpu.matmul %0, %1, %cst {dimension_numbers = #tpu.dot_dimension_numbers<[1], [0], [0], [1], [0, 0, 1, 1], [], []>} : vector<8x128xf32>, vector<128x128xf32>, vector<8x128xf32> -> vector<8x128xf32>
    %c0_3 = arith.constant 0 : index
    %c0_4 = arith.constant 0 : index
    %3 = vector.load %arg3[%c0_3, %c0_4] : memref<1x128xf32, #tpu.memory_space<vmem>>, vector<1x128xf32>
    %4 = vector.broadcast %3 : vector<1x128xf32> to vector<8x128xf32>
    %5 = arith.addf %2, %4 : vector<8x128xf32>
    %cst_5 = arith.constant 2.000000e-01 : f32
    %6 = vector.broadcast %cst_5 : f32 to vector<8x128xf32>
    %7 = arith.mulf %6, %5 : vector<8x128xf32>
    %8 = arith.maximumf %5, %7 : vector<8x128xf32>
    %c0_6 = arith.constant 0 : index
    %c0_7 = arith.constant 0 : index
    %9 = vector.load %arg4[%c0_6, %c0_7] : memref<128x128xf32, #tpu.memory_space<vmem>>, vector<128x128xf32>
    %cst_8 = arith.constant dense<0.000000e+00> : vector<8x128xf32>
    %10 = tpu.matmul %8, %9, %cst_8 {dimension_numbers = #tpu.dot_dimension_numbers<[1], [0], [0], [1], [0, 0, 1, 1], [], []>} : vector<8x128xf32>, vector<128x128xf32>, vector<8x128xf32> -> vector<8x128xf32>
    %c0_9 = arith.constant 0 : index
    %c0_10 = arith.constant 0 : index
    %11 = vector.load %arg5[%c0_9, %c0_10] : memref<1x128xf32, #tpu.memory_space<vmem>>, vector<1x128xf32>
    %12 = vector.broadcast %11 : vector<1x128xf32> to vector<8x128xf32>
    %13 = arith.addf %10, %12 : vector<8x128xf32>
    %c0_11 = arith.constant 0 : index
    %c0_12 = arith.constant 0 : index
    %14 = vector.load %arg6[%c0_11, %c0_12] : memref<8x128xf32, #tpu.memory_space<vmem>>, vector<8x128xf32>
    tpu.vector_store %arg6[%c0_11, %c0_12], %13 {strides = array<i32>} : memref<8x128xf32, #tpu.memory_space<vmem>>, vector<8x128xf32>,
    return
  }
  func.func @transform_0(%arg0: i32) -> (i32, i32) {
    %c0_i32 = arith.constant 0 : i32
    %c0_i32_0 = arith.constant 0 : i32
    return %arg0, %c0_i32 : i32, i32
  }
  func.func @transform_1(%arg0: i32) -> (i32, i32) {
    %c0_i32 = arith.constant 0 : i32
    %c0_i32_0 = arith.constant 0 : i32
    %c0_i32_1 = arith.constant 0 : i32
    return %c0_i32, %c0_i32_0 : i32, i32
  }
  func.func @transform_2(%arg0: i32) -> (i32, i32) {
    %c0_i32 = arith.constant 0 : i32
    %c0_i32_0 = arith.constant 0 : i32
    %c0_i32_1 = arith.constant 0 : i32
    return %c0_i32, %c0_i32_0 : i32, i32
  }
  func.func @transform_3(%arg0: i32) -> (i32, i32) {
    %c0_i32 = arith.constant 0 : i32
    %c0_i32_0 = arith.constant 0 : i32
    %c0_i32_1 = arith.constant 0 : i32
    return %c0_i32, %c0_i32_0 : i32, i32
  }
  func.func @transform_4(%arg0: i32) -> (i32, i32) {
    %c0_i32 = arith.constant 0 : i32
    %c0_i32_0 = arith.constant 0 : i32
    %c0_i32_1 = arith.constant 0 : i32
    return %c0_i32, %c0_i32_0 : i32, i32
  }
  func.func @transform_5(%arg0: i32) -> (i32, i32) {
    %c0_i32 = arith.constant 0 : i32
    %c0_i32_0 = arith.constant 0 : i32
    return %arg0, %c0_i32 : i32, i32
  }
}

</mosaic_0001>

<llo_original>
// kernel: tpu_custom_call.1
$region0: #{tpu_custom_call.1}
  #allocation0 [shape = 'u32[]', space=smem, size = 0x4, offset = 0x4, fixed_abs, tag = 'smem constant byte address 0x4 - core index']
  #allocation1 [shape = 'u32[144,128]{1,0:T(1,128)}', space=vmem, size = 0x12000, scoped, tag = 'internal scratch']
  %s0 = inlined_call_operand.hbm [shape: f32[8,128], index: 0, kind: input, shape index: {}]
  %s1 = inlined_call_operand.hbm [shape: f32[128,128], index: 1, kind: input, shape index: {}]
  %s2 = inlined_call_operand.vmem [shape: f32[1,128], index: 2, kind: input, shape index: {}]
  %s3 = inlined_call_operand.hbm [shape: f32[128,128], index: 3, kind: input, shape index: {}]
  %s4 = inlined_call_operand.vmem [shape: f32[1,128], index: 4, kind: input, shape index: {}]
  %s5 = inlined_call_operand.hbm [shape: f32[8,128], index: 5, kind: output, shape index: {}]
  %s6 = sld [smem:[#allocation0]]
  $region42: #{tpu_custom_call.1} parent=0
    _
  %s8 = ssub.s32 1, %s6
  %s9 = scalar_select 0, %s8, %s6
  $region1: #{tpu_custom_call.1} parent=0
    #allocation2 [shape = 'u8[4096]{0}', space=vmem, size = 0x1000, scoped, tag = 'input window, operand 0, single buffered']
    #allocation3 [shape = 's32[1]{0}', space=sflag, size = 0x4, scoped, tag = 'scoped memory for tpu_custom_call.1']
    #allocation4 [shape = 's32[1]{0}', space=sflag, size = 0x4, scoped, tag = 'scoped memory for tpu_custom_call.1']
    #allocation5 [shape = 'u8[65536]{0}', space=vmem, size = 0x10000, scoped, tag = 'input window, operand 1, single buffered']
    #allocation6 [shape = 's32[1]{0}', space=sflag, size = 0x4, scoped, tag = 'scoped memory for tpu_custom_call.1']
    #allocation7 [shape = 'u8[65536]{0}', space=vmem, size = 0x10000, scoped, tag = 'input window, operand 3, single buffered']
    #allocation8 [shape = 'u8[4096]{0}', space=vmem, size = 0x1000, scoped, tag = 'output window, operand 0, single buffered']
    %10 = vsyncpa [#allocation3], 0
    %11 = vsyncpa [#allocation6], 0
    %12 = vsyncpa [#allocation4], 0
    // Predicated region
    $region2: #{tpu_custom_call.1} parent=1 // pred_check
      _
    $region3: #{tpu_custom_call.1} parent=1 // pred_check_branch
      %14 = sbr.rel (0) target = $region5
    $region4: #{tpu_custom_call.1} parent=1 // pred_region
      %s16 = ssub.s32 128, 128
      %17 = vsyncadd [#allocation3], %s16
      %s19 = sshll.u32 [#allocation2], 4
      %s20 = int_to_ptr.vmem [resolvable:$true] %s19
      %22 = dma.hbm_to_vmem [thread:$0]  %s0, 128, %s20, [#allocation3]
    $region5: #{tpu_custom_call.1} parent=1 // pred_fallthru
      _
    // Predicated region
    $region6: #{tpu_custom_call.1} parent=1 // pred_check
      _
    $region7: #{tpu_custom_call.1} parent=1 // pred_check_branch
      %24 = sbr.rel (0) target = $region9
    $region8: #{tpu_custom_call.1} parent=1 // pred_region
      %s26 = ssub.s32 2048, 2048
      %27 = vsyncadd [#allocation6], %s26
      %s28 = sshll.u32 [#allocation5], 4
      %s29 = int_to_ptr.vmem [resolvable:$true] %s28
      %34 = dma.hbm_to_vmem [thread:$0]  %s1, 2048, %s29, [#allocation6], 128, 128, 8
    $region9: #{tpu_custom_call.1} parent=1 // pred_fallthru
      _
    // Predicated region
    $region10: #{tpu_custom_call.1} parent=1 // pred_check
      _
    $region11: #{tpu_custom_call.1} parent=1 // pred_check_branch
      %36 = sbr.rel (0) target = $region13
    $region12: #{tpu_custom_call.1} parent=1 // pred_region
      _
    $region13: #{tpu_custom_call.1} parent=1 // pred_fallthru
      _
    // Predicated region
    $region14: #{tpu_custom_call.1} parent=1 // pred_check
      _
    $region15: #{tpu_custom_call.1} parent=1 // pred_check_branch
      %38 = sbr.rel (0) target = $region17
    $region16: #{tpu_custom_call.1} parent=1 // pred_region
      %s40 = ssub.s32 2048, 2048
      %41 = vsyncadd [#allocation6], %s40
      %s42 = sshll.u32 [#allocation7], 4
      %s43 = int_to_ptr.vmem [resolvable:$true] %s42
      %48 = dma.hbm_to_vmem [thread:$0]  %s3, 2048, %s43, [#allocation6], 128, 128, 8
    $region17: #{tpu_custom_call.1} parent=1 // pred_fallthru
      _
    // Predicated region
    $region18: #{tpu_custom_call.1} parent=1 // pred_check
      _
    $region19: #{tpu_custom_call.1} parent=1 // pred_check_branch
      %50 = sbr.rel (0) target = $region21
    $region20: #{tpu_custom_call.1} parent=1 // pred_region
      _
    $region21: #{tpu_custom_call.1} parent=1 // pred_fallthru
      _
    // Predicated region
    $region22: #{tpu_custom_call.1} parent=1 // pred_check
      _
    $region23: #{tpu_custom_call.1} parent=1 // pred_check_branch
      %52 = sbr.rel (0) target = $region25
    $region24: #{tpu_custom_call.1} parent=1 // pred_region
      %53 = dma.done [#allocation3], 128
    $region25: #{tpu_custom_call.1} parent=1 // pred_fallthru
      _
    // Predicated region
    $region26: #{tpu_custom_call.1} parent=1 // pred_check
      _
    $region27: #{tpu_custom_call.1} parent=1 // pred_check_branch
      %55 = sbr.rel (0) target = $region29
    $region28: #{tpu_custom_call.1} parent=1 // pred_region
      %56 = dma.done [#allocation6], 2048
    $region29: #{tpu_custom_call.1} parent=1 // pred_fallthru
      _
    // Predicated region
    $region30: #{tpu_custom_call.1} parent=1 // pred_check
      _
    $region31: #{tpu_custom_call.1} parent=1 // pred_check_branch
      %58 = sbr.rel (0) target = $region33
    $region32: #{tpu_custom_call.1} parent=1 // pred_region
      %59 = dma.done [#allocation6], 2048
    $region33: #{tpu_custom_call.1} parent=1 // pred_fallthru
      _
    %v60 = vld [vmem:[#allocation2] sm:$0xff]
    %v61 = vld [vmem:[#allocation5] sm:$0xff]
    %v62 = vld [vmem:[#allocation5 + $0x8] sm:$0xff]
    %v63 = vld [vmem:[#allocation5 + $0x10] sm:$0xff]
    %v64 = vld [vmem:[#allocation5 + $0x18] sm:$0xff]
    %v65 = vld [vmem:[#allocation5 + $0x20] sm:$0xff]
    %v66 = vld [vmem:[#allocation5 + $0x28] sm:$0xff]
    %v67 = vld [vmem:[#allocation5 + $0x30] sm:$0xff]
    %v68 = vld [vmem:[#allocation5 + $0x38] sm:$0xff]
    %v69 = vld [vmem:[#allocation5 + $0x40] sm:$0xff]
    %v70 = vld [vmem:[#allocation5 + $0x48] sm:$0xff]
    %v71 = vld [vmem:[#allocation5 + $0x50] sm:$0xff]
    %v72 = vld [vmem:[#allocation5 + $0x58] sm:$0xff]
    %v73 = vld [vmem:[#allocation5 + $0x60] sm:$0xff]
    %v74 = vld [vmem:[#allocation5 + $0x68] sm:$0xff]
    %v75 = vld [vmem:[#allocation5 + $0x70] sm:$0xff]
    %v76 = vld [vmem:[#allocation5 + $0x78] sm:$0xff]
    %v77 = vld [vmem:[%s2] sm:$0x1]
    %v79 = vlaneseq
    %v80 = vshrl.u32 %v79, 7
    %v81 = vsub.s32 0, %v80
    %v82 = vrot.slane %v77, %v81
    %84 = vmatprep.subr.mxu0 0.0
    %85 = vmatpush1.msra.mxu0 %v76
    %86 = vmatprep.subr.mxu0 0.0
    %87 = vmatpush1.msra.mxu0 %v75
    %88 = vmatprep.subr.mxu0 0.0
    %89 = vmatpush1.msra.mxu0 %v74
    %90 = vmatprep.subr.mxu0 0.0
    %91 = vmatpush1.msra.mxu0 %v73
    %92 = vmatprep.subr.mxu0 0.0
    %93 = vmatpush1.msra.mxu0 %v72
    %94 = vmatprep.subr.mxu0 0.0
    %95 = vmatpush1.msra.mxu0 %v71
    %96 = vmatprep.subr.mxu0 0.0
    %97 = vmatpush1.msra.mxu0 %v70
    %98 = vmatprep.subr.mxu0 0.0
    %99 = vmatpush1.msra.mxu0 %v69
    %100 = vmatprep.subr.mxu0 0.0
    %101 = vmatpush1.msra.mxu0 %v68
    %102 = vmatprep.subr.mxu0 0.0
    %103 = vmatpush1.msra.mxu0 %v67
    %104 = vmatprep.subr.mxu0 0.0
    %105 = vmatpush1.msra.mxu0 %v66
    %106 = vmatprep.subr.mxu0 0.0
    %107 = vmatpush1.msra.mxu0 %v65
    %108 = vmatprep.subr.mxu0 0.0
    %109 = vmatpush1.msra.mxu0 %v64
    %110 = vmatprep.subr.mxu0 0.0
    %111 = vmatpush1.msra.mxu0 %v63
    %112 = vmatprep.subr.mxu0 0.0
    %113 = vmatpush1.msra.mxu0 %v62
    %114 = vmatprep.subr.mxu0 0.0
    %115 = vmatpush1.msra.mxu0 %v61
    %116 = vmatprep.subr.mxu0 0.0
    %117 = vmatpush2.msra.mxu0 0.0
    %118 = vmatprep.subr.mxu0 0.0
    %119 = vmatpush2.msra.mxu0 0.0
    %120 = vmatprep.subr.mxu0 0.0
    %121 = vmatpush2.msra.mxu0 0.0
    %122 = vmatprep.subr.mxu0 0.0
    %123 = vmatpush2.msra.mxu0 0.0
    %124 = vmatprep.subr.mxu0 0.0
    %125 = vmatpush2.msra.mxu0 0.0
    %126 = vmatprep.subr.mxu0 0.0
    %127 = vmatpush2.msra.mxu0 0.0
    %128 = vmatprep.subr.mxu0 0.0
    %129 = vmatpush2.msra.mxu0 0.0
    %130 = vmatprep.subr.mxu0 0.0
    %131 = vmatpush2.msra.mxu0 0.0
    %132 = vmatprep.subr.mxu0 0.0
    %133 = vmatpush2.msra.mxu0 0.0
    %134 = vmatprep.subr.mxu0 0.0
    %135 = vmatpush2.msra.mxu0 0.0
    %136 = vmatprep.subr.mxu0 0.0
    %137 = vmatpush2.msra.mxu0 0.0
    %138 = vmatprep.subr.mxu0 0.0
    %139 = vmatpush2.msra.mxu0 0.0
    %140 = vmatprep.subr.mxu0 0.0
    %141 = vmatpush2.msra.mxu0 0.0
    %142 = vmatprep.subr.mxu0 0.0
    %143 = vmatpush2.msra.mxu0 0.0
    %144 = vmatprep.subr.mxu0 0.0
    %145 = vmatpush2.msra.mxu0 0.0
    %146 = vmatprep.subr.mxu0 0.0
    %147 = vmatpush2.msra.mxu0 0.0
    %148 = vmatprep.mubr.f32.mxu0 0.0
    %149 = vmatmul.mubr.f32.gmra.mxu0 %v60
    %v150 = vpop.f32.mrf.mxu0
    %v151 = vadd.f32 %v82, %v150
    %v152 = vpop.f32.mrf.mxu0
    %153 = vdwg.mxu0
    %v154 = vmul.f32 %v151, 0.2
    %v155 = vmax.f32 %v151, %v154
    %v156 = vld [vmem:[#allocation7] sm:$0xff]
    %v157 = vld [vmem:[#allocation7 + $0x8] sm:$0xff]
    %v158 = vld [vmem:[#allocation7 + $0x10] sm:$0xff]
    %v159 = vld [vmem:[#allocation7 + $0x18] sm:$0xff]
    %v160 = vld [vmem:[#allocation7 + $0x20] sm:$0xff]
    %v161 = vld [vmem:[#allocation7 + $0x28] sm:$0xff]
    %v162 = vld [vmem:[#allocation7 + $0x30] sm:$0xff]
    %v163 = vld [vmem:[#allocation7 + $0x38] sm:$0xff]
    %v164 = vld [vmem:[#allocation7 + $0x40] sm:$0xff]
    %v165 = vld [vmem:[#allocation7 + $0x48] sm:$0xff]
    %v166 = vld [vmem:[#allocation7 + $0x50] sm:$0xff]
    %v167 = vld [vmem:[#allocation7 + $0x58] sm:$0xff]
    %v168 = vld [vmem:[#allocation7 + $0x60] sm:$0xff]
    %v169 = vld [vmem:[#allocation7 + $0x68] sm:$0xff]
    %v170 = vld [vmem:[#allocation7 + $0x70] sm:$0xff]
    %v171 = vld [vmem:[#allocation7 + $0x78] sm:$0xff]
    %v172 = vld [vmem:[%s4] sm:$0x1]
    %v174 = vlaneseq
    %v175 = vshrl.u32 %v174, 7
    %v176 = vsub.s32 0, %v175
    %v177 = vrot.slane %v172, %v176
    %179 = vmatprep.subr.mxu0 0.0
    %180 = vmatpush1.msra.mxu0 %v171
    %181 = vmatprep.subr.mxu0 0.0
    %182 = vmatpush1.msra.mxu0 %v170
    %183 = vmatprep.subr.mxu0 0.0
    %184 = vmatpush1.msra.mxu0 %v169
    %185 = vmatprep.subr.mxu0 0.0
    %186 = vmatpush1.msra.mxu0 %v168
    %187 = vmatprep.subr.mxu0 0.0
    %188 = vmatpush1.msra.mxu0 %v167
    %189 = vmatprep.subr.mxu0 0.0
    %190 = vmatpush1.msra.mxu0 %v166
    %191 = vmatprep.subr.mxu0 0.0
    %192 = vmatpush1.msra.mxu0 %v165
    %193 = vmatprep.subr.mxu0 0.0
    %194 = vmatpush1.msra.mxu0 %v164
    %195 = vmatprep.subr.mxu0 0.0
    %196 = vmatpush1.msra.mxu0 %v163
    %197 = vmatprep.subr.mxu0 0.0
    %198 = vmatpush1.msra.mxu0 %v162
    %199 = vmatprep.subr.mxu0 0.0
    %200 = vmatpush1.msra.mxu0 %v161
    %201 = vmatprep.subr.mxu0 0.0
    %202 = vmatpush1.msra.mxu0 %v160
    %203 = vmatprep.subr.mxu0 0.0
    %204 = vmatpush1.msra.mxu0 %v159
    %205 = vmatprep.subr.mxu0 0.0
    %206 = vmatpush1.msra.mxu0 %v158
    %207 = vmatprep.subr.mxu0 0.0
    %208 = vmatpush1.msra.mxu0 %v157
    %209 = vmatprep.subr.mxu0 0.0
    %210 = vmatpush1.msra.mxu0 %v156
    %211 = vmatprep.subr.mxu0 0.0
    %212 = vmatpush2.msra.mxu0 0.0
    %213 = vmatprep.subr.mxu0 0.0
    %214 = vmatpush2.msra.mxu0 0.0
    %215 = vmatprep.subr.mxu0 0.0
    %216 = vmatpush2.msra.mxu0 0.0
    %217 = vmatprep.subr.mxu0 0.0
    %218 = vmatpush2.msra.mxu0 0.0
    %219 = vmatprep.subr.mxu0 0.0
    %220 = vmatpush2.msra.mxu0 0.0
    %221 = vmatprep.subr.mxu0 0.0
    %222 = vmatpush2.msra.mxu0 0.0
    %223 = vmatprep.subr.mxu0 0.0
    %224 = vmatpush2.msra.mxu0 0.0
    %225 = vmatprep.subr.mxu0 0.0
    %226 = vmatpush2.msra.mxu0 0.0
    %227 = vmatprep.subr.mxu0 0.0
    %228 = vmatpush2.msra.mxu0 0.0
    %229 = vmatprep.subr.mxu0 0.0
    %230 = vmatpush2.msra.mxu0 0.0
    %231 = vmatprep.subr.mxu0 0.0
    %232 = vmatpush2.msra.mxu0 0.0
    %233 = vmatprep.subr.mxu0 0.0
    %234 = vmatpush2.msra.mxu0 0.0
    %235 = vmatprep.subr.mxu0 0.0
    %236 = vmatpush2.msra.mxu0 0.0
    %237 = vmatprep.subr.mxu0 0.0
    %238 = vmatpush2.msra.mxu0 0.0
    %239 = vmatprep.subr.mxu0 0.0
    %240 = vmatpush2.msra.mxu0 0.0
    %241 = vmatprep.subr.mxu0 0.0
    %242 = vmatpush2.msra.mxu0 0.0
    %243 = vmatprep.mubr.f32.mxu0 0.0
    %244 = vmatmul.mubr.f32.gmra.mxu0 %v155
    %v245 = vpop.f32.mrf.mxu0
    %v246 = vadd.f32 %v177, %v245
    %v247 = vpop.f32.mrf.mxu0
    %248 = vdwg.mxu0
    %249 = vst [vmem:[#allocation8] sm:$0xff] %v246
    // Predicated region
    $region34: #{tpu_custom_call.1} parent=1 // pred_check
      _
    $region35: #{tpu_custom_call.1} parent=1 // pred_check_branch
      %251 = sbr.rel (0) target = $region37
    $region36: #{tpu_custom_call.1} parent=1 // pred_region
      %s253 = ssub.s32 128, 128
      %254 = vsyncadd [#allocation4], %s253
      %s256 = sshll.u32 [#allocation8], 4
      %s257 = int_to_ptr.vmem [resolvable:$true] %s256
      %259 = dma.vmem_to_hbm [thread:$0]  %s257, 128, %s5, [#allocation4]
    $region37: #{tpu_custom_call.1} parent=1 // pred_fallthru
      _
    // Predicated region
    $region38: #{tpu_custom_call.1} parent=1 // pred_check
      _
    $region39: #{tpu_custom_call.1} parent=1 // pred_check_branch
      %261 = sbr.rel (0) target = $region41
    $region40: #{tpu_custom_call.1} parent=1 // pred_region
      %262 = dma.done [#allocation4], 128
    $region41: #{tpu_custom_call.1} parent=1 // pred_fallthru
      _
    %263 = vsyncpa [#allocation3], 1
    %264 = vsyncpa [#allocation6], 1
    %265 = vsyncpa [#allocation4], 1

</llo_original>
